<compile_context>
chip_gen: v6e
topology: v6e:2x2x1
jax: 0.10.0
libtpu: 0.0.40
codegen_flags: <defaults>
</compile_context>

<pallas_src>
import math
import jax
import jax.numpy as jnp
from jax.experimental import pallas as pl
from jax.experimental.pallas import tpu as pltpu

# ----------------------------- configuration --------------------------------
EMB_DIM = 32
CAT_FEATURE_DIMS = (10, 7, 5)          # feature_dims[0]
NUM_SCALAR = 4                         # feature_dims[1]
SIGMA_EMBED_DIM = 0
NUM_CAT = len(CAT_FEATURE_DIMS)
NUM_SCALAR_TOTAL = NUM_SCALAR + SIGMA_EMBED_DIM
VOCAB_PAD = max(CAT_FEATURE_DIMS)      # 10
K_CAT = NUM_CAT * VOCAB_PAD            # 30 one-hot columns per logical row
F_TOT = NUM_CAT + NUM_SCALAR_TOTAL     # 7 input columns per logical row

ROW_GROUP = 128 // EMB_DIM             # 4 logical rows per 128-lane output row
G_F = ROW_GROUP * F_TOT                # 28  grouped input width
G_K = ROW_GROUP * K_CAT                # 120 grouped one-hot width
G_E = ROW_GROUP * EMB_DIM              # 128 grouped output width (lane-dense)

TILE_N = 4096                          # logical rows per grid step (default)
ROW_ALIGN = ROW_GROUP * 8              # tile must be a multiple of 32


def _round_up(a, b):
    return (a + b - 1) // b * b


# ------------------------------- kernel -------------------------------------
def atom_encoder_kernel(x_ref, t_ref, w_ref, out_ref):
    # x_ref: (tile_g, G_F)  -> 4 logical rows packed per grouped row.
    g = x_ref.shape[0]
    x = x_ref[...]                                              # (g, 28) f32
    ids = x.astype(jnp.int32)                                   # trunc == .long() for valid idx

    # Fused one-hot over (ROW_GROUP x NUM_CAT) categorical features:
    # single iota + 12 compares.  Column layout of the one-hot / T_bd rows:
    #   block r (logical sub-row r): [r*K_CAT + i*VOCAB_PAD + idx_i].
    iota = jax.lax.broadcasted_iota(jnp.int32, (g, G_K), 1)     # (g, 120)
    match = None
    for r in range(ROW_GROUP):
        for i in range(NUM_CAT):
            col = r * F_TOT + i
            target = ids[:, col:col + 1] + (r * K_CAT + i * VOCAB_PAD)
            m = iota == target
            match = m if match is None else (match | m)
    onehot = match.astype(jnp.float32)                          # (g, 120)

    # Two MXU matmuls against block-diagonal fused params (no lane concat):
    #   onehot @ T_bd  -> embedding-table sums (+ bias, folded into table 0)
    #   x      @ W_bd  -> linear(scalars)      (cat columns hit zero rows)
    acc = jnp.dot(onehot, t_ref[...], preferred_element_type=jnp.float32)
    acc = acc + jnp.dot(x, w_ref[...], preferred_element_type=jnp.float32)
    out_ref[...] = acc                                          # (g, 128) unmasked store


# ------------------------------ wrapper --------------------------------------
def atom_encoder(x, t_bd, w_bd, *, tile_n=TILE_N):
    """x: [N, F_TOT] float32 (categorical indices stored as floats, then scalars)."""
    n, f = x.shape
    assert f == F_TOT
    # NOTE: out-of-range / negative categorical indices are not validated here
    # (nn.Embedding would raise); inputs are assumed well-formed.

    # Tile sizing: multiple of 32; cap so small inputs don't over-pad and large
    # inputs give >= 2 grid steps (keeps both v7x TensorCores busy).
    tile_n = _round_up(max(32, tile_n), ROW_ALIGN)
    tile_n = max(ROW_ALIGN, min(tile_n, _round_up((n + 1) // 2, ROW_ALIGN)))
    n_pad = _round_up(n, tile_n)
    if n_pad != n:
        x = jnp.pad(x, ((0, n_pad - n), (0, 0)))                # padded rows -> idx 0, sliced off

    # Free row-major reshape: pack ROW_GROUP logical rows per grouped row.
    xg = x.reshape(n_pad // ROW_GROUP, G_F)
    tile_g = tile_n // ROW_GROUP
    grid = (n_pad // tile_n,)

    out_g = pl.pallas_call(
        atom_encoder_kernel,
        out_shape=jax.ShapeDtypeStruct((n_pad // ROW_GROUP, G_E), jnp.float32),
        grid=grid,
        in_specs=[
            pl.BlockSpec((tile_g, G_F), lambda i: (i, 0)),      # grouped x tile
            pl.BlockSpec((G_K, G_E), lambda i: (0, 0)),         # block-diag tables+bias (resident)
            pl.BlockSpec((G_F, G_E), lambda i: (0, 0)),         # block-diag linear W (resident)
        ],
        out_specs=pl.BlockSpec((tile_g, G_E), lambda i: (i, 0)),
        compiler_params=pltpu.CompilerParams(
            dimension_semantics=("parallel",),
            vmem_limit_bytes=32 * 1024 * 1024,
        ),
        cost_estimate=pl.CostEstimate(
            flops=2 * n_pad * (K_CAT + F_TOT) * EMB_DIM,
            transcendentals=0,
            bytes_accessed=n_pad * 4 * (F_TOT + EMB_DIM) + (G_K + G_F) * G_E * 4,
        ),
    )(xg, t_bd, w_bd)

    # Free reshape back to (n_pad, EMB_DIM), drop padding rows.
    return out_g.reshape(n_pad, EMB_DIM)[:n]


# ------------------------ deterministic parameter init -----------------------
def init_params(key):
    keys = jax.random.split(key, NUM_CAT + 2)
    # Embedding tables: xavier_uniform_ on (vocab, emb_dim), zero-padded to VOCAB_PAD.
    tables = []
    for i, vocab in enumerate(CAT_FEATURE_DIMS):
        bound = math.sqrt(6.0 / (vocab + EMB_DIM))
        t = jax.random.uniform(keys[i], (vocab, EMB_DIM),
                               minval=-bound, maxval=bound, dtype=jnp.float32)
        t = jnp.pad(t, ((0, VOCAB_PAD - vocab), (0, 0)))
        tables.append(t)
    tables = jnp.stack(tables, axis=0)                 # (NUM_CAT, VOCAB_PAD, EMB_DIM)

    # Linear: PyTorch default init U(-1/sqrt(in), 1/sqrt(in)).
    lb = 1.0 / math.sqrt(NUM_SCALAR_TOTAL)
    w = jax.random.uniform(keys[-2], (NUM_SCALAR_TOTAL, EMB_DIM),
                           minval=-lb, maxval=lb, dtype=jnp.float32)
    b = jax.random.uniform(keys[-1], (1, EMB_DIM),
                           minval=-lb, maxval=lb, dtype=jnp.float32)
    return tables, w, b


def pack_params(tables, w, b):
    """Build block-diagonal fused parameters (done once, outside the kernel).

    T_bd: (G_K, G_E)  block r -> rows [r*K_CAT, (r+1)*K_CAT), cols [r*E, (r+1)*E)
          holding the flattened tables, with the bias folded into table-0's
          rows (every logical row has exactly one table-0 one-hot hit).
    W_bd: (G_F, G_E)  block r -> scalar rows [r*F_TOT+NUM_CAT, (r+1)*F_TOT),
          cols [r*E, (r+1)*E) holding the Linear weight; categorical rows = 0.
    """
    tab_flat = tables.reshape(K_CAT, EMB_DIM)                       # (30, 32)
    tab_flat = tab_flat.at[:CAT_FEATURE_DIMS[0]].add(b)             # fold bias into table 0

    t_bd = jnp.zeros((G_K, G_E), jnp.float32)
    w_bd = jnp.zeros((G_F, G_E), jnp.float32)
    for r in range(ROW_GROUP):
        t_bd = t_bd.at[r * K_CAT:(r + 1) * K_CAT,
                       r * EMB_DIM:(r + 1) * EMB_DIM].set(tab_flat)
        w_bd = w_bd.at[r * F_TOT + NUM_CAT:(r + 1) * F_TOT,
                       r * EMB_DIM:(r + 1) * EMB_DIM].set(w)
    return t_bd, w_bd


# ----------------------------- reference (pure JAX) --------------------------
def atom_encoder_ref(x, tables, w, b):
    idx = x[:, :NUM_CAT].astype(jnp.int32)
    scalars = x[:, NUM_CAT:NUM_CAT + NUM_SCALAR_TOTAL].astype(jnp.float32)
    out = jnp.zeros((x.shape[0], EMB_DIM), jnp.float32)
    for i in range(NUM_CAT):
        out = out + tables[i][idx[:, i]]
    out = out + scalars @ w + b
    return out


# --------------------------------- main --------------------------------------
if __name__ == "__main__":
    key = jax.random.PRNGKey(0)
    k_param, k_idx, k_scal = jax.random.split(key, 3)

    N = 8  # number of atoms/nodes
    tables, w, b = init_params(k_param)
    t_bd, w_bd = pack_params(tables, w, b)

    # Build x: categorical indices (as floats, like the PyTorch input) + scalar feats.
    cat_cols = []
    idx_keys = jax.random.split(k_idx, NUM_CAT)
    for i, vocab in enumerate(CAT_FEATURE_DIMS):
        cat_cols.append(
            jax.random.randint(idx_keys[i], (N, 1), 0, vocab).astype(jnp.float32))
    scal_cols = jax.random.normal(k_scal, (N, NUM_SCALAR_TOTAL), dtype=jnp.float32)
    x = jnp.concatenate(cat_cols + [scal_cols], axis=1)   # (N, 7)

    out = atom_encoder(x, t_bd, w_bd)
    out = jax.block_until_ready(out)

    ref = atom_encoder_ref(x, tables, w, b)
    assert out.shape == (N, EMB_DIM)
    assert jnp.allclose(out, ref, atol=1e-5, rtol=1e-5), "mismatch vs reference"

    # TODO(synk): optional bf16 output store (halves the dominant HBM write) if
    # the downstream consumer tolerates bf16 embeddings.
    print("KERNEL_OK")
</pallas_src>

<mosaic_0001>
module attributes {stable_mosaic.version = 11 : i64} {
  func.func @atom_encoder_kernel(%arg0: i32, %arg1: memref<8x28xf32, #tpu.memory_space<vmem>>, %arg2: memref<120x128xf32, #tpu.memory_space<vmem>>, %arg3: memref<28x128xf32, #tpu.memory_space<vmem>>, %arg4: memref<8x128xf32, #tpu.memory_space<vmem>>) attributes {dimension_semantics = [#tpu.dimension_semantics<parallel>], iteration_bounds = array<i64: 1>, scalar_prefetch = 0 : i64, scratch_operands = 0 : i64, tpu.core_type = #tpu.core_type<tc>, window_params = [{transform_indices = @transform_0, window_bounds = array<i64: 8, 28>}, {pipeline_mode = #tpu.pipeline_mode<synchronous>, transform_indices = @transform_1, window_bounds = array<i64: 120, 128>}, {pipeline_mode = #tpu.pipeline_mode<synchronous>, transform_indices = @transform_2, window_bounds = array<i64: 28, 128>}, {transform_indices = @transform_3, window_bounds = array<i64: 8, 128>}]} {
    %c0 = arith.constant 0 : index
    %c0_0 = arith.constant 0 : index
    %0 = vector.load %arg1[%c0, %c0_0] : memref<8x28xf32, #tpu.memory_space<vmem>>, vector<8x28xf32>
    %1 = arith.fptosi %0 : vector<8x28xf32> to vector<8x28xi32>
    %2 = tpu.iota {dimensions = array<i32: 1>} : vector<8x120xi32>
    %3 = vector.extract_strided_slice %1 {offsets = [0, 0], sizes = [8, 1], strides = [1, 1]} : vector<8x28xi32> to vector<8x1xi32>
    %c0_i32 = arith.constant 0 : i32
    %4 = vector.broadcast %c0_i32 : i32 to vector<8x1xi32>
    %5 = arith.addi %3, %4 : vector<8x1xi32>
    %6 = vector.broadcast %5 : vector<8x1xi32> to vector<8x120xi32>
    %7 = arith.cmpi eq, %2, %6 : vector<8x120xi32>
    %8 = vector.extract_strided_slice %1 {offsets = [0, 1], sizes = [8, 1], strides = [1, 1]} : vector<8x28xi32> to vector<8x1xi32>
    %c10_i32 = arith.constant 10 : i32
    %9 = vector.broadcast %c10_i32 : i32 to vector<8x1xi32>
    %10 = arith.addi %8, %9 : vector<8x1xi32>
    %11 = vector.broadcast %10 : vector<8x1xi32> to vector<8x120xi32>
    %12 = arith.cmpi eq, %2, %11 : vector<8x120xi32>
    %13 = arith.ori %7, %12 : vector<8x120xi1>
    %14 = vector.extract_strided_slice %1 {offsets = [0, 2], sizes = [8, 1], strides = [1, 1]} : vector<8x28xi32> to vector<8x1xi32>
    %c20_i32 = arith.constant 20 : i32
    %15 = vector.broadcast %c20_i32 : i32 to vector<8x1xi32>
    %16 = arith.addi %14, %15 : vector<8x1xi32>
    %17 = vector.broadcast %16 : vector<8x1xi32> to vector<8x120xi32>
    %18 = arith.cmpi eq, %2, %17 : vector<8x120xi32>
    %19 = arith.ori %13, %18 : vector<8x120xi1>
    %20 = vector.extract_strided_slice %1 {offsets = [0, 7], sizes = [8, 1], strides = [1, 1]} : vector<8x28xi32> to vector<8x1xi32>
    %c30_i32 = arith.constant 30 : i32
    %21 = vector.broadcast %c30_i32 : i32 to vector<8x1xi32>
    %22 = arith.addi %20, %21 : vector<8x1xi32>
    %23 = vector.broadcast %22 : vector<8x1xi32> to vector<8x120xi32>
    %24 = arith.cmpi eq, %2, %23 : vector<8x120xi32>
    %25 = arith.ori %19, %24 : vector<8x120xi1>
    %26 = vector.extract_strided_slice %1 {offsets = [0, 8], sizes = [8, 1], strides = [1, 1]} : vector<8x28xi32> to vector<8x1xi32>
    %c40_i32 = arith.constant 40 : i32
    %27 = vector.broadcast %c40_i32 : i32 to vector<8x1xi32>
    %28 = arith.addi %26, %27 : vector<8x1xi32>
    %29 = vector.broadcast %28 : vector<8x1xi32> to vector<8x120xi32>
    %30 = arith.cmpi eq, %2, %29 : vector<8x120xi32>
    %31 = arith.ori %25, %30 : vector<8x120xi1>
    %32 = vector.extract_strided_slice %1 {offsets = [0, 9], sizes = [8, 1], strides = [1, 1]} : vector<8x28xi32> to vector<8x1xi32>
    %c50_i32 = arith.constant 50 : i32
    %33 = vector.broadcast %c50_i32 : i32 to vector<8x1xi32>
    %34 = arith.addi %32, %33 : vector<8x1xi32>
    %35 = vector.broadcast %34 : vector<8x1xi32> to vector<8x120xi32>
    %36 = arith.cmpi eq, %2, %35 : vector<8x120xi32>
    %37 = arith.ori %31, %36 : vector<8x120xi1>
    %38 = vector.extract_strided_slice %1 {offsets = [0, 14], sizes = [8, 1], strides = [1, 1]} : vector<8x28xi32> to vector<8x1xi32>
    %c60_i32 = arith.constant 60 : i32
    %39 = vector.broadcast %c60_i32 : i32 to vector<8x1xi32>
    %40 = arith.addi %38, %39 : vector<8x1xi32>
    %41 = vector.broadcast %40 : vector<8x1xi32> to vector<8x120xi32>
    %42 = arith.cmpi eq, %2, %41 : vector<8x120xi32>
    %43 = arith.ori %37, %42 : vector<8x120xi1>
    %44 = vector.extract_strided_slice %1 {offsets = [0, 15], sizes = [8, 1], strides = [1, 1]} : vector<8x28xi32> to vector<8x1xi32>
    %c70_i32 = arith.constant 70 : i32
    %45 = vector.broadcast %c70_i32 : i32 to vector<8x1xi32>
    %46 = arith.addi %44, %45 : vector<8x1xi32>
    %47 = vector.broadcast %46 : vector<8x1xi32> to vector<8x120xi32>
    %48 = arith.cmpi eq, %2, %47 : vector<8x120xi32>
    %49 = arith.ori %43, %48 : vector<8x120xi1>
    %50 = vector.extract_strided_slice %1 {offsets = [0, 16], sizes = [8, 1], strides = [1, 1]} : vector<8x28xi32> to vector<8x1xi32>
    %c80_i32 = arith.constant 80 : i32
    %51 = vector.broadcast %c80_i32 : i32 to vector<8x1xi32>
    %52 = arith.addi %50, %51 : vector<8x1xi32>
    %53 = vector.broadcast %52 : vector<8x1xi32> to vector<8x120xi32>
    %54 = arith.cmpi eq, %2, %53 : vector<8x120xi32>
    %55 = arith.ori %49, %54 : vector<8x120xi1>
    %56 = vector.extract_strided_slice %1 {offsets = [0, 21], sizes = [8, 1], strides = [1, 1]} : vector<8x28xi32> to vector<8x1xi32>
    %c90_i32 = arith.constant 90 : i32
    %57 = vector.broadcast %c90_i32 : i32 to vector<8x1xi32>
    %58 = arith.addi %56, %57 : vector<8x1xi32>
    %59 = vector.broadcast %58 : vector<8x1xi32> to vector<8x120xi32>
    %60 = arith.cmpi eq, %2, %59 : vector<8x120xi32>
    %61 = arith.ori %55, %60 : vector<8x120xi1>
    %62 = vector.extract_strided_slice %1 {offsets = [0, 22], sizes = [8, 1], strides = [1, 1]} : vector<8x28xi32> to vector<8x1xi32>
    %c100_i32 = arith.constant 100 : i32
    %63 = vector.broadcast %c100_i32 : i32 to vector<8x1xi32>
    %64 = arith.addi %62, %63 : vector<8x1xi32>
    %65 = vector.broadcast %64 : vector<8x1xi32> to vector<8x120xi32>
    %66 = arith.cmpi eq, %2, %65 : vector<8x120xi32>
    %67 = arith.ori %61, %66 : vector<8x120xi1>
    %68 = vector.extract_strided_slice %1 {offsets = [0, 23], sizes = [8, 1], strides = [1, 1]} : vector<8x28xi32> to vector<8x1xi32>
    %c110_i32 = arith.constant 110 : i32
    %69 = vector.broadcast %c110_i32 : i32 to vector<8x1xi32>
    %70 = arith.addi %68, %69 : vector<8x1xi32>
    %71 = vector.broadcast %70 : vector<8x1xi32> to vector<8x120xi32>
    %72 = arith.cmpi eq, %2, %71 : vector<8x120xi32>
    %73 = arith.ori %67, %72 : vector<8x120xi1>
    %74 = arith.extui %73 : vector<8x120xi1> to vector<8x120xi32>
    %75 = arith.sitofp %74 : vector<8x120xi32> to vector<8x120xf32>
    %c0_1 = arith.constant 0 : index
    %c0_2 = arith.constant 0 : index
    %76 = vector.load %arg2[%c0_1, %c0_2] : memref<120x128xf32, #tpu.memory_space<vmem>>, vector<120x128xf32>
    %cst = arith.constant dense<0.000000e+00> : vector<8x128xf32>
    %77 = tpu.matmul %75, %76, %cst {dimension_numbers = #tpu.dot_dimension_numbers<[1], [0], [0], [1], [0, 0, 1, 1], [], []>} : vector<8x120xf32>, vector<120x128xf32>, vector<8x128xf32> -> vector<8x128xf32>
    %c0_3 = arith.constant 0 : index
    %c0_4 = arith.constant 0 : index
    %78 = vector.load %arg3[%c0_3, %c0_4] : memref<28x128xf32, #tpu.memory_space<vmem>>, vector<28x128xf32>
    %cst_5 = arith.constant dense<0.000000e+00> : vector<8x128xf32>
    %79 = tpu.matmul %0, %78, %cst_5 {dimension_numbers = #tpu.dot_dimension_numbers<[1], [0], [0], [1], [0, 0, 1, 1], [], []>} : vector<8x28xf32>, vector<28x128xf32>, vector<8x128xf32> -> vector<8x128xf32>
    %80 = arith.addf %77, %79 : vector<8x128xf32>
    %c0_6 = arith.constant 0 : index
    %c0_7 = arith.constant 0 : index
    %81 = vector.load %arg4[%c0_6, %c0_7] : memref<8x128xf32, #tpu.memory_space<vmem>>, vector<8x128xf32>
    tpu.vector_store %arg4[%c0_6, %c0_7], %80 {strides = array<i32>} : memref<8x128xf32, #tpu.memory_space<vmem>>, vector<8x128xf32>,
    return
  }
  func.func @transform_0(%arg0: i32) -> (i32, i32) {
    %c0_i32 = arith.constant 0 : i32
    %c0_i32_0 = arith.constant 0 : i32
    return %arg0, %c0_i32 : i32, i32
  }
  func.func @transform_1(%arg0: i32) -> (i32, i32) {
    %c0_i32 = arith.constant 0 : i32
    %c0_i32_0 = arith.constant 0 : i32
    %c0_i32_1 = arith.constant 0 : i32
    return %c0_i32, %c0_i32_0 : i32, i32
  }
  func.func @transform_2(%arg0: i32) -> (i32, i32) {
    %c0_i32 = arith.constant 0 : i32
    %c0_i32_0 = arith.constant 0 : i32
    %c0_i32_1 = arith.constant 0 : i32
    return %c0_i32, %c0_i32_0 : i32, i32
  }
  func.func @transform_3(%arg0: i32) -> (i32, i32) {
    %c0_i32 = arith.constant 0 : i32
    %c0_i32_0 = arith.constant 0 : i32
    return %arg0, %c0_i32 : i32, i32
  }
}

</mosaic_0001>

<llo_original>
// kernel: tpu_custom_call.1
$region0: #{tpu_custom_call.1}
  #allocation0 [shape = 'u32[]', space=smem, size = 0x4, offset = 0x4, fixed_abs, tag = 'smem constant byte address 0x4 - core index']
  #allocation1 [shape = 'u32[144,128]{1,0:T(1,128)}', space=vmem, size = 0x12000, scoped, tag = 'internal scratch']
  %s0 = inlined_call_operand.hbm [shape: f32[8,28], index: 0, kind: input, shape index: {}]
  %s1 = inlined_call_operand.hbm [shape: f32[120,128], index: 1, kind: input, shape index: {}]
  %s2 = inlined_call_operand.hbm [shape: f32[28,128], index: 2, kind: input, shape index: {}]
  %s3 = inlined_call_operand.hbm [shape: f32[8,128], index: 3, kind: output, shape index: {}]
  %s4 = sld [smem:[#allocation0]]
  $region34: #{tpu_custom_call.1} parent=0
    _
  %s6 = ssub.s32 1, %s4
  %s7 = scalar_select 0, %s6, %s4
  $region1: #{tpu_custom_call.1} parent=0
    #allocation2 [shape = 'u8[4096]{0}', space=vmem, size = 0x1000, scoped, tag = 'input window, operand 0, single buffered']
    #allocation3 [shape = 's32[1]{0}', space=sflag, size = 0x4, scoped, tag = 'scoped memory for tpu_custom_call.1']
    #allocation4 [shape = 's32[1]{0}', space=sflag, size = 0x4, scoped, tag = 'scoped memory for tpu_custom_call.1']
    #allocation5 [shape = 'u8[61440]{0}', space=vmem, size = 0xf000, scoped, tag = 'input window, operand 1, single buffered']
    #allocation6 [shape = 's32[1]{0}', space=sflag, size = 0x4, scoped, tag = 'scoped memory for tpu_custom_call.1']
    #allocation7 [shape = 'u8[16384]{0}', space=vmem, size = 0x4000, scoped, tag = 'input window, operand 2, single buffered']
    #allocation8 [shape = 'u8[4096]{0}', space=vmem, size = 0x1000, scoped, tag = 'output window, operand 0, single buffered']
    %8 = vsyncpa [#allocation3], 0
    %9 = vsyncpa [#allocation6], 0
    %10 = vsyncpa [#allocation4], 0
    // Predicated region
    $region2: #{tpu_custom_call.1} parent=1 // pred_check
      _
    $region3: #{tpu_custom_call.1} parent=1 // pred_check_branch
      %12 = sbr.rel (0) target = $region5
    $region4: #{tpu_custom_call.1} parent=1 // pred_region
      %s14 = ssub.s32 128, 128
      %15 = vsyncadd [#allocation3], %s14
      %s17 = sshll.u32 [#allocation2], 4
      %s18 = int_to_ptr.vmem [resolvable:$true] %s17
      %20 = dma.hbm_to_vmem [thread:$0]  %s0, 128, %s18, [#allocation3]
    $region5: #{tpu_custom_call.1} parent=1 // pred_fallthru
      _
    // Predicated region
    $region6: #{tpu_custom_call.1} parent=1 // pred_check
      _
    $region7: #{tpu_custom_call.1} parent=1 // pred_check_branch
      %22 = sbr.rel (0) target = $region9
    $region8: #{tpu_custom_call.1} parent=1 // pred_region
      %s24 = ssub.s32 1920, 1920
      %25 = vsyncadd [#allocation6], %s24
      %s26 = sshll.u32 [#allocation5], 4
      %s27 = int_to_ptr.vmem [resolvable:$true] %s26
      %32 = dma.hbm_to_vmem [thread:$0]  %s1, 1920, %s27, [#allocation6], 128, 128, 8
    $region9: #{tpu_custom_call.1} parent=1 // pred_fallthru
      _
    // Predicated region
    $region10: #{tpu_custom_call.1} parent=1 // pred_check
      _
    $region11: #{tpu_custom_call.1} parent=1 // pred_check_branch
      %34 = sbr.rel (0) target = $region13
    $region12: #{tpu_custom_call.1} parent=1 // pred_region
      %s36 = ssub.s32 512, 512
      %37 = vsyncadd [#allocation6], %s36
      %s38 = sshll.u32 [#allocation7], 4
      %s39 = int_to_ptr.vmem [resolvable:$true] %s38
      %44 = dma.hbm_to_vmem [thread:$0]  %s2, 512, %s39, [#allocation6], 128, 128, 8
    $region13: #{tpu_custom_call.1} parent=1 // pred_fallthru
      _
    // Predicated region
    $region14: #{tpu_custom_call.1} parent=1 // pred_check
      _
    $region15: #{tpu_custom_call.1} parent=1 // pred_check_branch
      %46 = sbr.rel (0) target = $region17
    $region16: #{tpu_custom_call.1} parent=1 // pred_region
      %47 = dma.done [#allocation3], 128
    $region17: #{tpu_custom_call.1} parent=1 // pred_fallthru
      _
    // Predicated region
    $region18: #{tpu_custom_call.1} parent=1 // pred_check
      _
    $region19: #{tpu_custom_call.1} parent=1 // pred_check_branch
      %49 = sbr.rel (0) target = $region21
    $region20: #{tpu_custom_call.1} parent=1 // pred_region
      %50 = dma.done [#allocation6], 1920
    $region21: #{tpu_custom_call.1} parent=1 // pred_fallthru
      _
    // Predicated region
    $region22: #{tpu_custom_call.1} parent=1 // pred_check
      _
    $region23: #{tpu_custom_call.1} parent=1 // pred_check_branch
      %52 = sbr.rel (0) target = $region25
    $region24: #{tpu_custom_call.1} parent=1 // pred_region
      %53 = dma.done [#allocation6], 512
    $region25: #{tpu_custom_call.1} parent=1 // pred_fallthru
      _
    %v54 = vld [vmem:[#allocation2] sm:$0xff]
    %v55 = vcvt.f32.s32.to.zero.pseudo %v54
    %v56 = vlaneseq
    %v57 = vand.u32 %v56, 127
    %58 = vset.pattern.permute.xlu0 0
    %59 = vperm.xlu0 %58, %v55
    %v60 = vpop.permute.xlu0 %59
    %vm61 = vcmp.eq.s32.totalorder %v57, %v60
    %v62 = vadd.s32 %v55, 10
    %63 = vset.pattern.permute.xlu0 1
    %64 = vperm.xlu0 %63, %v62
    %v65 = vpop.permute.xlu0 %64
    %vm66 = vcmp.eq.s32.totalorder %v57, %v65
    %vm67 = vmor %vm61, %vm66
    %v68 = vadd.s32 %v55, 20
    %69 = vset.pattern.permute.xlu0 2
    %70 = vperm.xlu0 %69, %v68
    %v71 = vpop.permute.xlu0 %70
    %vm72 = vcmp.eq.s32.totalorder %v57, %v71
    %vm73 = vmor %vm67, %vm72
    %v74 = vadd.s32 %v55, 30
    %75 = vset.pattern.permute.xlu0 7
    %76 = vperm.xlu0 %75, %v74
    %v77 = vpop.permute.xlu0 %76
    %vm78 = vcmp.eq.s32.totalorder %v57, %v77
    %vm79 = vmor %vm73, %vm78
    %v80 = vadd.s32 %v55, 40
    %81 = vset.pattern.permute.xlu0 8
    %82 = vperm.xlu0 %81, %v80
    %v83 = vpop.permute.xlu0 %82
    %vm84 = vcmp.eq.s32.totalorder %v57, %v83
    %vm85 = vmor %vm79, %vm84
    %v86 = vadd.s32 %v55, 50
    %87 = vset.pattern.permute.xlu0 9
    %88 = vperm.xlu0 %87, %v86
    %v89 = vpop.permute.xlu0 %88
    %vm90 = vcmp.eq.s32.totalorder %v57, %v89
    %vm91 = vmor %vm85, %vm90
    %v92 = vadd.s32 %v55, 60
    %93 = vset.pattern.permute.xlu0 14
    %94 = vperm.xlu0 %93, %v92
    %v95 = vpop.permute.xlu0 %94
    %vm96 = vcmp.eq.s32.totalorder %v57, %v95
    %vm97 = vmor %vm91, %vm96
    %v98 = vadd.s32 %v55, 70
    %99 = vset.pattern.permute.xlu0 15
    %100 = vperm.xlu0 %99, %v98
    %v101 = vpop.permute.xlu0 %100
    %vm102 = vcmp.eq.s32.totalorder %v57, %v101
    %vm103 = vmor %vm97, %vm102
    %v104 = vadd.s32 %v55, 80
    %105 = vset.pattern.permute.xlu0 16
    %106 = vperm.xlu0 %105, %v104
    %v107 = vpop.permute.xlu0 %106
    %vm108 = vcmp.eq.s32.totalorder %v57, %v107
    %vm109 = vmor %vm103, %vm108
    %v110 = vadd.s32 %v55, 90
    %111 = vset.pattern.permute.xlu0 21
    %112 = vperm.xlu0 %111, %v110
    %v113 = vpop.permute.xlu0 %112
    %vm114 = vcmp.eq.s32.totalorder %v57, %v113
    %vm115 = vmor %vm109, %vm114
    %v116 = vadd.s32 %v55, 100
    %117 = vset.pattern.permute.xlu0 22
    %118 = vperm.xlu0 %117, %v116
    %v119 = vpop.permute.xlu0 %118
    %vm120 = vcmp.eq.s32.totalorder %v57, %v119
    %vm121 = vmor %vm115, %vm120
    %v122 = vadd.s32 %v55, 110
    %123 = vset.pattern.permute.xlu0 23
    %124 = vperm.xlu0 %123, %v122
    %v125 = vpop.permute.xlu0 %124
    %vm126 = vcmp.eq.s32.totalorder %v57, %v125
    %vm127 = vmor %vm121, %vm126
    %v128 = vsel %vm127, 1, 0
    %v129 = vcvt.s32.f32 %v128
    %v130 = vld [vmem:[#allocation5] sm:$0xff]
    %v131 = vld [vmem:[#allocation5 + $0x8] sm:$0xff]
    %v132 = vld [vmem:[#allocation5 + $0x10] sm:$0xff]
    %v133 = vld [vmem:[#allocation5 + $0x18] sm:$0xff]
    %v134 = vld [vmem:[#allocation5 + $0x20] sm:$0xff]
    %v135 = vld [vmem:[#allocation5 + $0x28] sm:$0xff]
    %v136 = vld [vmem:[#allocation5 + $0x30] sm:$0xff]
    %v137 = vld [vmem:[#allocation5 + $0x38] sm:$0xff]
    %v138 = vld [vmem:[#allocation5 + $0x40] sm:$0xff]
    %v139 = vld [vmem:[#allocation5 + $0x48] sm:$0xff]
    %v140 = vld [vmem:[#allocation5 + $0x50] sm:$0xff]
    %v141 = vld [vmem:[#allocation5 + $0x58] sm:$0xff]
    %v142 = vld [vmem:[#allocation5 + $0x60] sm:$0xff]
    %v143 = vld [vmem:[#allocation5 + $0x68] sm:$0xff]
    %v144 = vld [vmem:[#allocation5 + $0x70] sm:$0xff]
    %v145 = vld [vmem:[#allocation7] sm:$0xff]
    %v146 = vld [vmem:[#allocation7 + $0x8] sm:$0xff]
    %v147 = vld [vmem:[#allocation7 + $0x10] sm:$0xff]
    %v148 = vld [vmem:[#allocation7 + $0x18] sm:$0xf]
    %vm149 = vcmask 228352
    %v151 = vsel %vm149, %v54, 0
    %vm153 = vcmask 1043456
    %v155 = vsel %vm153, %v148, 0
    %157 = vmatprep.subr.mxu0 0.0
    %158 = vmatpush1.msra.mxu0 0.0
    %159 = vmatprep.subr.mxu0 0.0
    %160 = vmatpush1.msra.mxu0 0.0
    %161 = vmatprep.subr.mxu0 0.0
    %162 = vmatpush1.msra.mxu0 0.0
    %163 = vmatprep.subr.mxu0 0.0
    %164 = vmatpush1.msra.mxu0 0.0
    %165 = vmatprep.subr.mxu0 0.0
    %166 = vmatpush1.msra.mxu0 0.0
    %167 = vmatprep.subr.mxu0 0.0
    %168 = vmatpush1.msra.mxu0 0.0
    %169 = vmatprep.subr.mxu0 0.0
    %170 = vmatpush1.msra.mxu0 0.0
    %171 = vmatprep.subr.mxu0 0.0
    %172 = vmatpush1.msra.mxu0 0.0
    %173 = vmatprep.subr.mxu0 0.0
    %174 = vmatpush1.msra.mxu0 0.0
    %175 = vmatprep.subr.mxu0 0.0
    %176 = vmatpush1.msra.mxu0 0.0
    %177 = vmatprep.subr.mxu0 0.0
    %178 = vmatpush1.msra.mxu0 0.0
    %179 = vmatprep.subr.mxu0 0.0
    %180 = vmatpush1.msra.mxu0 0.0
    %181 = vmatprep.subr.mxu0 0.0
    %182 = vmatpush1.msra.mxu0 %v155
    %183 = vmatprep.subr.mxu0 0.0
    %184 = vmatpush1.msra.mxu0 %v147
    %185 = vmatprep.subr.mxu0 0.0
    %186 = vmatpush1.msra.mxu0 %v146
    %187 = vmatprep.subr.mxu0 0.0
    %188 = vmatpush1.msra.mxu0 %v145
    %189 = vmatprep.subr.mxu0 0.0
    %190 = vmatpush2.msra.mxu0 0.0
    %191 = vmatprep.subr.mxu0 0.0
    %192 = vmatpush2.msra.mxu0 0.0
    %193 = vmatprep.subr.mxu0 0.0
    %194 = vmatpush2.msra.mxu0 0.0
    %195 = vmatprep.subr.mxu0 0.0
    %196 = vmatpush2.msra.mxu0 0.0
    %197 = vmatprep.subr.mxu0 0.0
    %198 = vmatpush2.msra.mxu0 0.0
    %199 = vmatprep.subr.mxu0 0.0
    %200 = vmatpush2.msra.mxu0 0.0
    %201 = vmatprep.subr.mxu0 0.0
    %202 = vmatpush2.msra.mxu0 0.0
    %203 = vmatprep.subr.mxu0 0.0
    %204 = vmatpush2.msra.mxu0 0.0
    %205 = vmatprep.subr.mxu0 0.0
    %206 = vmatpush2.msra.mxu0 0.0
    %207 = vmatprep.subr.mxu0 0.0
    %208 = vmatpush2.msra.mxu0 0.0
    %209 = vmatprep.subr.mxu0 0.0
    %210 = vmatpush2.msra.mxu0 0.0
    %211 = vmatprep.subr.mxu0 0.0
    %212 = vmatpush2.msra.mxu0 0.0
    %213 = vmatprep.subr.mxu0 0.0
    %214 = vmatpush2.msra.mxu0 0.0
    %215 = vmatprep.subr.mxu0 0.0
    %216 = vmatpush2.msra.mxu0 0.0
    %217 = vmatprep.subr.mxu0 0.0
    %218 = vmatpush2.msra.mxu0 0.0
    %219 = vmatprep.subr.mxu0 0.0
    %220 = vmatpush2.msra.mxu0 0.0
    %221 = vmatprep.mubr.f32.mxu0 0.0
    %222 = vmatmul.mubr.f32.gmra.mxu0 %v151
    %v223 = vpop.f32.mrf.mxu0
    %v224 = vadd.f32 0.0, %v223
    %v225 = vpop.f32.mrf.mxu0
    %226 = vdwg.mxu0
    %vm227 = vcmask 982016
    %v229 = vsel %vm227, %v129, 0
    %231 = vmatprep.subr.mxu0 0.0
    %232 = vmatpush1.msra.mxu0 0.0
    %233 = vmatprep.subr.mxu0 0.0
    %234 = vmatpush1.msra.mxu0 %v144
    %235 = vmatprep.subr.mxu0 0.0
    %236 = vmatpush1.msra.mxu0 %v143
    %237 = vmatprep.subr.mxu0 0.0
    %238 = vmatpush1.msra.mxu0 %v142
    %239 = vmatprep.subr.mxu0 0.0
    %240 = vmatpush1.msra.mxu0 %v141
    %241 = vmatprep.subr.mxu0 0.0
    %242 = vmatpush1.msra.mxu0 %v140
    %243 = vmatprep.subr.mxu0 0.0
    %244 = vmatpush1.msra.mxu0 %v139
    %245 = vmatprep.subr.mxu0 0.0
    %246 = vmatpush1.msra.mxu0 %v138
    %247 = vmatprep.subr.mxu0 0.0
    %248 = vmatpush1.msra.mxu0 %v137
    %249 = vmatprep.subr.mxu0 0.0
    %250 = vmatpush1.msra.mxu0 %v136
    %251 = vmatprep.subr.mxu0 0.0
    %252 = vmatpush1.msra.mxu0 %v135
    %253 = vmatprep.subr.mxu0 0.0
    %254 = vmatpush1.msra.mxu0 %v134
    %255 = vmatprep.subr.mxu0 0.0
    %256 = vmatpush1.msra.mxu0 %v133
    %257 = vmatprep.subr.mxu0 0.0
    %258 = vmatpush1.msra.mxu0 %v132
    %259 = vmatprep.subr.mxu0 0.0
    %260 = vmatpush1.msra.mxu0 %v131
    %261 = vmatprep.subr.mxu0 0.0
    %262 = vmatpush1.msra.mxu0 %v130
    %263 = vmatprep.subr.mxu0 0.0
    %264 = vmatpush2.msra.mxu0 0.0
    %265 = vmatprep.subr.mxu0 0.0
    %266 = vmatpush2.msra.mxu0 0.0
    %267 = vmatprep.subr.mxu0 0.0
    %268 = vmatpush2.msra.mxu0 0.0
    %269 = vmatprep.subr.mxu0 0.0
    %270 = vmatpush2.msra.mxu0 0.0
    %271 = vmatprep.subr.mxu0 0.0
    %272 = vmatpush2.msra.mxu0 0.0
    %273 = vmatprep.subr.mxu0 0.0
    %274 = vmatpush2.msra.mxu0 0.0
    %275 = vmatprep.subr.mxu0 0.0
    %276 = vmatpush2.msra.mxu0 0.0
    %277 = vmatprep.subr.mxu0 0.0
    %278 = vmatpush2.msra.mxu0 0.0
    %279 = vmatprep.subr.mxu0 0.0
    %280 = vmatpush2.msra.mxu0 0.0
    %281 = vmatprep.subr.mxu0 0.0
    %282 = vmatpush2.msra.mxu0 0.0
    %283 = vmatprep.subr.mxu0 0.0
    %284 = vmatpush2.msra.mxu0 0.0
    %285 = vmatprep.subr.mxu0 0.0
    %286 = vmatpush2.msra.mxu0 0.0
    %287 = vmatprep.subr.mxu0 0.0
    %288 = vmatpush2.msra.mxu0 0.0
    %289 = vmatprep.subr.mxu0 0.0
    %290 = vmatpush2.msra.mxu0 0.0
    %291 = vmatprep.subr.mxu0 0.0
    %292 = vmatpush2.msra.mxu0 0.0
    %293 = vmatprep.subr.mxu0 0.0
    %294 = vmatpush2.msra.mxu0 0.0
    %295 = vmatprep.mubr.f32.mxu0 0.0
    %296 = vmatmul.mubr.f32.gmra.mxu0 %v229
    %v297 = vpop.f32.mrf.mxu0
    %v298 = vadd.f32 %v224, %v297
    %v299 = vpop.f32.mrf.mxu0
    %300 = vdwg.mxu0
    %301 = vst [vmem:[#allocation8] sm:$0xff] %v298
    // Predicated region
    $region26: #{tpu_custom_call.1} parent=1 // pred_check
      _
    $region27: #{tpu_custom_call.1} parent=1 // pred_check_branch
      %303 = sbr.rel (0) target = $region29
    $region28: #{tpu_custom_call.1} parent=1 // pred_region
      %s305 = ssub.s32 128, 128
      %306 = vsyncadd [#allocation4], %s305
      %s308 = sshll.u32 [#allocation8], 4
      %s309 = int_to_ptr.vmem [resolvable:$true] %s308
      %311 = dma.vmem_to_hbm [thread:$0]  %s309, 128, %s3, [#allocation4]
    $region29: #{tpu_custom_call.1} parent=1 // pred_fallthru
      _
    // Predicated region
    $region30: #{tpu_custom_call.1} parent=1 // pred_check
      _
    $region31: #{tpu_custom_call.1} parent=1 // pred_check_branch
      %313 = sbr.rel (0) target = $region33
    $region32: #{tpu_custom_call.1} parent=1 // pred_region
      %314 = dma.done [#allocation4], 128
    $region33: #{tpu_custom_call.1} parent=1 // pred_fallthru
      _
    %315 = vsyncpa [#allocation3], 1
    %316 = vsyncpa [#allocation6], 1
    %317 = vsyncpa [#allocation4], 1

</llo_original>
